<compile_context>
chip_gen: v7x
topology: tpu7x:2x2x1
jax: 0.10.0
libtpu: 0.0.40
codegen_flags: <defaults>
</compile_context>

<pallas_src>
import functools

import jax
import jax.numpy as jnp
from jax.experimental import pallas as pl
from jax.experimental.pallas import tpu as pltpu


def _laplace_partial_kernel(x_ref, y_ref, out_ref, *, use_l1):
    """One grid step: (B_TILE, 3, H, W) slabs -> (1, 1, W-2) lane partial sum."""
    # Linearity of the Laplacian: lap(x) - lap(y) == lap(x - y).
    d = x_ref[...].astype(jnp.float32) - y_ref[...].astype(jnp.float32)

    # Valid 3x3 cross-correlation with [[0,-1,0],[-1,4,-1],[0,-1,0]]:
    # 4*center - up - down - left - right on the (H-2, W-2) interior.
    c = d[:, :, 1:-1, 1:-1]
    lap = (4.0 * c
           - d[:, :, :-2, 1:-1]    # up
           - d[:, :, 2:, 1:-1]     # down
           - d[:, :, 1:-1, :-2]    # left
           - d[:, :, 1:-1, 2:])    # right

    v = jnp.abs(lap) if use_l1 else lap * lap            # (B, 3, H-2, W-2)

    # Reduce batch+channel (vreg-wise VPU adds), then sublanes; keep the lane
    # axis and defer the final cross-lane reduce to the JAX wrapper.
    rows = jnp.sum(v, axis=(0, 1))                        # (H-2, W-2)
    out_ref[0] = jnp.sum(rows, axis=0, keepdims=True)     # (1, W-2)


def _vmem_budget():
    """(vmem_limit_bytes, per-input-buffer byte budget) per TPU generation."""
    try:
        phys = int(pltpu.get_tpu_info().vmem_capacity_bytes)  # 128MiB v5e/v6e, 64MiB v7x
    except Exception:
        phys = 64 << 20  # conservative fallback (v7x physical size)
    vmem_limit = min(phys // 2, 40 << 20)  # 40MiB on v5e/v6e, 32MiB on v7x
    per_buffer = vmem_limit // 8           # 2 inputs x 2 pipeline buffers = half the limit
    return vmem_limit, per_buffer


def _largest_divisor_leq(n, cap):
    cap = max(1, min(n, cap))
    for d in range(cap, 0, -1):
        if n % d == 0:
            return d
    return 1


def laplace_loss(x, y, *, use_l1=False, batch_tile=None):
    """x, y: (N, C>=3, H, W), NCHW float. Returns the scalar LaplaceLoss."""
    N, C, H, W = x.shape
    assert y.shape == x.shape and C >= 3 and H > 2 and W > 2
    count = float(N * (H - 2) * (W - 2))  # identical element count per channel

    vmem_limit, per_buffer = _vmem_budget()
    per_slab = 3 * H * W * 4  # one (3, H, W) f32 slab
    if batch_tile is None:
        # Largest batch tile that divides N and keeps 2 inputs x 2 pipeline
        # buffers inside the VMEM budget (re-derived per generation above).
        # TODO(synk): for very large H*W (single slab > budget) block along H
        # with a 2-row halo instead of shrinking the batch tile below 1.
        batch_tile = _largest_divisor_leq(N, max(1, per_buffer // per_slab))
    assert N % batch_tile == 0
    grid = (N // batch_tile,)

    kernel = functools.partial(_laplace_partial_kernel, use_l1=use_l1)
    partials = pl.pallas_call(
        kernel,
        out_shape=jax.ShapeDtypeStruct((grid[0], 1, W - 2), jnp.float32),
        grid_spec=pltpu.PrefetchScalarGridSpec(
            num_scalar_prefetch=0,
            grid=grid,
            in_specs=[
                # Channel block of size 3 at block index 0 == channels 0,1,2.
                pl.BlockSpec((batch_tile, 3, H, W), lambda i: (i, 0, 0, 0)),
                pl.BlockSpec((batch_tile, 3, H, W), lambda i: (i, 0, 0, 0)),
            ],
            out_specs=pl.BlockSpec((1, 1, W - 2), lambda i: (i, 0, 0)),
        ),
        compiler_params=pltpu.CompilerParams(
            dimension_semantics=("parallel",),  # per-block partials: no carried state
            vmem_limit_bytes=vmem_limit,
        ),
    )(x, y)

    # Final cross-block / cross-lane reduce and normalization.
    return jnp.sum(partials) / count


def _reference_loss(x, y, use_l1=False):
    # Plain-JAX reference matching the PyTorch module.
    def lap(a):  # a: (N, H, W)
        c = a[:, 1:-1, 1:-1]
        return (4.0 * c - a[:, :-2, 1:-1] - a[:, 2:, 1:-1]
                - a[:, 1:-1, :-2] - a[:, 1:-1, 2:])

    total = 0.0
    for ch in range(3):
        d = lap(x[:, ch]) - lap(y[:, ch])
        total = total + (jnp.mean(jnp.abs(d)) if use_l1 else jnp.mean(d * d))
    return total


if __name__ == "__main__":
    key = jax.random.PRNGKey(0)
    k1, k2 = jax.random.split(key)
    N, C, H, W = 2, 3, 16, 16
    x = jax.random.normal(k1, (N, C, H, W), dtype=jnp.float32)
    y = jax.random.normal(k2, (N, C, H, W), dtype=jnp.float32)

    # Default config (fused batch+channel tile -> single grid step here), MSE.
    loss = jax.block_until_ready(laplace_loss(x, y, use_l1=False))
    ref = _reference_loss(x, y, use_l1=False)
    assert jnp.allclose(loss, ref, rtol=1e-5, atol=1e-5), (loss, ref)

    # Multi-block path (batch_tile=1 -> grid=(N,), per-block partial outputs).
    loss_mb = jax.block_until_ready(laplace_loss(x, y, use_l1=False, batch_tile=1))
    assert jnp.allclose(loss_mb, ref, rtol=1e-5, atol=1e-5), (loss_mb, ref)

    # L1 variant (opt.laplace_use_l1=True).
    loss_l1 = jax.block_until_ready(laplace_loss(x, y, use_l1=True))
    ref_l1 = _reference_loss(x, y, use_l1=True)
    assert jnp.allclose(loss_l1, ref_l1, rtol=1e-5, atol=1e-5), (loss_l1, ref_l1)

    print("KERNEL_OK")
</pallas_src>

<mosaic_0001>
module attributes {stable_mosaic.version = 11 : i64} {
  func.func @_laplace_partial_kernel(%arg0: i32, %arg1: memref<2x3x16x16xf32, #tpu.memory_space<vmem>>, %arg2: memref<2x3x16x16xf32, #tpu.memory_space<vmem>>, %arg3: memref<1x1x14xf32, #tpu.memory_space<vmem>>) attributes {dimension_semantics = [#tpu.dimension_semantics<parallel>], iteration_bounds = array<i64: 1>, scalar_prefetch = 0 : i64, scratch_operands = 0 : i64, tpu.core_type = #tpu.core_type<tc>, window_params = [{transform_indices = @transform_0, window_bounds = array<i64: 2, 3, 16, 16>}, {transform_indices = @transform_1, window_bounds = array<i64: 2, 3, 16, 16>}, {transform_indices = @transform_2, window_bounds = array<i64: 1, 1, 14>}]} {
    %c0 = arith.constant 0 : index
    %c0_0 = arith.constant 0 : index
    %c0_1 = arith.constant 0 : index
    %c0_2 = arith.constant 0 : index
    %0 = vector.load %arg1[%c0, %c0_0, %c0_1, %c0_2] : memref<2x3x16x16xf32, #tpu.memory_space<vmem>>, vector<2x3x16x16xf32>
    %c0_3 = arith.constant 0 : index
    %c0_4 = arith.constant 0 : index
    %c0_5 = arith.constant 0 : index
    %c0_6 = arith.constant 0 : index
    %1 = vector.load %arg2[%c0_3, %c0_4, %c0_5, %c0_6] : memref<2x3x16x16xf32, #tpu.memory_space<vmem>>, vector<2x3x16x16xf32>
    %2 = arith.subf %0, %1 : vector<2x3x16x16xf32>
    %3 = vector.extract_strided_slice %2 {offsets = [0, 0, 1, 1], sizes = [2, 3, 14, 14], strides = [1, 1, 1, 1]} : vector<2x3x16x16xf32> to vector<2x3x14x14xf32>
    %cst = arith.constant 4.000000e+00 : f32
    %4 = vector.broadcast %cst : f32 to vector<2x3x14x14xf32>
    %5 = arith.mulf %4, %3 : vector<2x3x14x14xf32>
    %6 = vector.extract_strided_slice %2 {offsets = [0, 0, 0, 1], sizes = [2, 3, 14, 14], strides = [1, 1, 1, 1]} : vector<2x3x16x16xf32> to vector<2x3x14x14xf32>
    %7 = arith.subf %5, %6 : vector<2x3x14x14xf32>
    %8 = vector.extract_strided_slice %2 {offsets = [0, 0, 2, 1], sizes = [2, 3, 14, 14], strides = [1, 1, 1, 1]} : vector<2x3x16x16xf32> to vector<2x3x14x14xf32>
    %9 = arith.subf %7, %8 : vector<2x3x14x14xf32>
    %10 = vector.extract_strided_slice %2 {offsets = [0, 0, 1, 0], sizes = [2, 3, 14, 14], strides = [1, 1, 1, 1]} : vector<2x3x16x16xf32> to vector<2x3x14x14xf32>
    %11 = arith.subf %9, %10 : vector<2x3x14x14xf32>
    %12 = vector.extract_strided_slice %2 {offsets = [0, 0, 1, 2], sizes = [2, 3, 14, 14], strides = [1, 1, 1, 1]} : vector<2x3x16x16xf32> to vector<2x3x14x14xf32>
    %13 = arith.subf %11, %12 : vector<2x3x14x14xf32>
    %14 = arith.mulf %13, %13 : vector<2x3x14x14xf32>
    %cst_7 = arith.constant dense<0.000000e+00> : vector<14x14xf32>
    %15 = vector.multi_reduction <add>, %14, %cst_7 [0, 1] : vector<2x3x14x14xf32> to vector<14x14xf32>
    %cst_8 = arith.constant dense<0.000000e+00> : vector<14xf32>
    %16 = vector.multi_reduction <add>, %15, %cst_8 [0] : vector<14x14xf32> to vector<14xf32>
    %17 = vector.shape_cast %16 : vector<14xf32> to vector<1x14xf32>
    %c0_9 = arith.constant 0 : index
    %c0_10 = arith.constant 0 : index
    %c0_11 = arith.constant 0 : index
    %18 = vector.load %arg3[%c0_9, %c0_10, %c0_11] : memref<1x1x14xf32, #tpu.memory_space<vmem>>, vector<1x1x14xf32>
    %19 = vector.shape_cast %18 : vector<1x1x14xf32> to vector<1x14xf32>
    %20 = vector.shape_cast %17 : vector<1x14xf32> to vector<1x1x14xf32>
    tpu.vector_store %arg3[%c0_9, %c0_10, %c0_11], %20 {strides = array<i32>} : memref<1x1x14xf32, #tpu.memory_space<vmem>>, vector<1x1x14xf32>,
    return
  }
  func.func @transform_0(%arg0: i32) -> (i32, i32, i32, i32) {
    %c0_i32 = arith.constant 0 : i32
    %c0_i32_0 = arith.constant 0 : i32
    %c0_i32_1 = arith.constant 0 : i32
    %c0_i32_2 = arith.constant 0 : i32
    return %arg0, %c0_i32, %c0_i32_0, %c0_i32_1 : i32, i32, i32, i32
  }
  func.func @transform_1(%arg0: i32) -> (i32, i32, i32, i32) {
    %c0_i32 = arith.constant 0 : i32
    %c0_i32_0 = arith.constant 0 : i32
    %c0_i32_1 = arith.constant 0 : i32
    %c0_i32_2 = arith.constant 0 : i32
    return %arg0, %c0_i32, %c0_i32_0, %c0_i32_1 : i32, i32, i32, i32
  }
  func.func @transform_2(%arg0: i32) -> (i32, i32, i32) {
    %c0_i32 = arith.constant 0 : i32
    %c0_i32_0 = arith.constant 0 : i32
    %c0_i32_1 = arith.constant 0 : i32
    return %arg0, %c0_i32, %c0_i32_0 : i32, i32, i32
  }
}

</mosaic_0001>

<llo_original>
// kernel: tpu_custom_call.1
$region0: #{tpu_custom_call.1}
  #allocation0 [shape = 'u32[]', space=smem, size = 0x4, offset = 0x4, fixed_abs, tag = 'smem constant byte address 0x4 - core index']
  #allocation1 [shape = 'u32[144,128]{1,0:T(1,128)}', space=vmem, size = 0x12000, scoped, tag = 'internal scratch']
  %s0 = inlined_call_operand.hbm [shape: f32[2,3,16,16], index: 0, kind: input, shape index: {}]
  %s1 = inlined_call_operand.hbm [shape: f32[2,3,16,16], index: 1, kind: input, shape index: {}]
  %s2 = inlined_call_operand.hbm [shape: f32[1,1,14], index: 2, kind: output, shape index: {}]
  %s3 = sld [smem:[#allocation0]]
  $region26: #{tpu_custom_call.1} parent=0
    _
  %s5 = ssub.s32 1, %s3
  %s6 = scalar_select 0, %s5, %s3
  $region1: #{tpu_custom_call.1} parent=0
    #allocation2 [shape = 'u8[49152]{0}', space=vmem, size = 0xc000, scoped, tag = 'input window, operand 0, single buffered']
    #allocation3 [shape = 's32[1]{0}', space=sflag, size = 0x4, scoped, tag = 'scoped memory for tpu_custom_call.1']
    #allocation4 [shape = 's32[1]{0}', space=sflag, size = 0x4, scoped, tag = 'scoped memory for tpu_custom_call.1']
    #allocation5 [shape = 'u8[49152]{0}', space=vmem, size = 0xc000, scoped, tag = 'input window, operand 1, single buffered']
    #allocation6 [shape = 's32[1]{0}', space=sflag, size = 0x4, scoped, tag = 'scoped memory for tpu_custom_call.1']
    #allocation7 [shape = 'u8[512]{0}', space=vmem, size = 0x400, scoped, tag = 'output window, operand 0, single buffered']
    %7 = vsyncpa [#allocation3], 0
    %8 = vsyncpa [#allocation6], 0
    %9 = vsyncpa [#allocation4], 0
    // Predicated region
    $region2: #{tpu_custom_call.1} parent=1 // pred_check
      _
    $region3: #{tpu_custom_call.1} parent=1 // pred_check_branch
      %11 = sbr.rel (0) target = $region5
    $region4: #{tpu_custom_call.1} parent=1 // pred_region
      %s13 = ssub.s32 1536, 1536
      %14 = vsyncadd [#allocation3], %s13
      %s15 = sshll.u32 [#allocation2], 4
      %s16 = int_to_ptr.vmem [resolvable:$true] %s15
      %21 = dma.hbm_to_vmem [thread:$0]  %s0, 1536, %s16, [#allocation3], 128, 128, 8
    $region5: #{tpu_custom_call.1} parent=1 // pred_fallthru
      _
    // Predicated region
    $region6: #{tpu_custom_call.1} parent=1 // pred_check
      _
    $region7: #{tpu_custom_call.1} parent=1 // pred_check_branch
      %23 = sbr.rel (0) target = $region9
    $region8: #{tpu_custom_call.1} parent=1 // pred_region
      %s25 = ssub.s32 1536, 1536
      %26 = vsyncadd [#allocation6], %s25
      %s27 = sshll.u32 [#allocation5], 4
      %s28 = int_to_ptr.vmem [resolvable:$true] %s27
      %33 = dma.hbm_to_vmem [thread:$0]  %s1, 1536, %s28, [#allocation6], 128, 128, 8
    $region9: #{tpu_custom_call.1} parent=1 // pred_fallthru
      _
    // Predicated region
    $region10: #{tpu_custom_call.1} parent=1 // pred_check
      _
    $region11: #{tpu_custom_call.1} parent=1 // pred_check_branch
      %35 = sbr.rel (0) target = $region13
    $region12: #{tpu_custom_call.1} parent=1 // pred_region
      %36 = dma.done [#allocation3], 1536
    $region13: #{tpu_custom_call.1} parent=1 // pred_fallthru
      _
    // Predicated region
    $region14: #{tpu_custom_call.1} parent=1 // pred_check
      _
    $region15: #{tpu_custom_call.1} parent=1 // pred_check_branch
      %38 = sbr.rel (0) target = $region17
    $region16: #{tpu_custom_call.1} parent=1 // pred_region
      %39 = dma.done [#allocation6], 1536
    $region17: #{tpu_custom_call.1} parent=1 // pred_fallthru
      _
    %v40 = vld [vmem:[#allocation2] sm:$0xff]
    %v41 = vld [vmem:[#allocation2 + $0x8] sm:$0xff]
    %v42 = vld [vmem:[#allocation2 + $0x10] sm:$0xff]
    %v43 = vld [vmem:[#allocation2 + $0x18] sm:$0xff]
    %v44 = vld [vmem:[#allocation2 + $0x20] sm:$0xff]
    %v45 = vld [vmem:[#allocation2 + $0x28] sm:$0xff]
    %v46 = vld [vmem:[#allocation2 + $0x30] sm:$0xff]
    %v47 = vld [vmem:[#allocation2 + $0x38] sm:$0xff]
    %v48 = vld [vmem:[#allocation2 + $0x40] sm:$0xff]
    %v49 = vld [vmem:[#allocation2 + $0x48] sm:$0xff]
    %v50 = vld [vmem:[#allocation2 + $0x50] sm:$0xff]
    %v51 = vld [vmem:[#allocation2 + $0x58] sm:$0xff]
    %v52 = vld [vmem:[#allocation5] sm:$0xff]
    %v53 = vld [vmem:[#allocation5 + $0x8] sm:$0xff]
    %v54 = vld [vmem:[#allocation5 + $0x10] sm:$0xff]
    %v55 = vld [vmem:[#allocation5 + $0x18] sm:$0xff]
    %v56 = vld [vmem:[#allocation5 + $0x20] sm:$0xff]
    %v57 = vld [vmem:[#allocation5 + $0x28] sm:$0xff]
    %v58 = vld [vmem:[#allocation5 + $0x30] sm:$0xff]
    %v59 = vld [vmem:[#allocation5 + $0x38] sm:$0xff]
    %v60 = vld [vmem:[#allocation5 + $0x40] sm:$0xff]
    %v61 = vld [vmem:[#allocation5 + $0x48] sm:$0xff]
    %v62 = vld [vmem:[#allocation5 + $0x50] sm:$0xff]
    %v63 = vld [vmem:[#allocation5 + $0x58] sm:$0xff]
    %v64 = vsub.f32 %v40, %v52
    %v65 = vsub.f32 %v41, %v53
    %v66 = vsub.f32 %v42, %v54
    %v67 = vsub.f32 %v43, %v55
    %v68 = vsub.f32 %v44, %v56
    %v69 = vsub.f32 %v45, %v57
    %v70 = vsub.f32 %v46, %v58
    %v71 = vsub.f32 %v47, %v59
    %v72 = vsub.f32 %v48, %v60
    %v73 = vsub.f32 %v49, %v61
    %v74 = vsub.f32 %v50, %v62
    %v75 = vsub.f32 %v51, %v63
    %v76 = vmul.f32 %v64, 4.0
    %v77 = vmul.f32 %v65, 4.0
    %v78 = vmul.f32 %v66, 4.0
    %v79 = vmul.f32 %v67, 4.0
    %v80 = vmul.f32 %v68, 4.0
    %v81 = vmul.f32 %v69, 4.0
    %v82 = vmul.f32 %v70, 4.0
    %v83 = vmul.f32 %v71, 4.0
    %v84 = vmul.f32 %v72, 4.0
    %v85 = vmul.f32 %v73, 4.0
    %v86 = vmul.f32 %v74, 4.0
    %v87 = vmul.f32 %v75, 4.0
    %vm100 = vcmask 1040384
    %v101 = vrot.slane %v64, 7
    %v102 = vrot.slane %v65, 7
    %v103 = vsel %vm100, %v101, %v102
    %v104 = vrot.slane %v66, 7
    %v105 = vrot.slane %v67, 7
    %v106 = vsel %vm100, %v104, %v105
    %v107 = vrot.slane %v68, 7
    %v108 = vrot.slane %v69, 7
    %v109 = vsel %vm100, %v107, %v108
    %v110 = vrot.slane %v70, 7
    %v111 = vrot.slane %v71, 7
    %v112 = vsel %vm100, %v110, %v111
    %v113 = vrot.slane %v72, 7
    %v114 = vrot.slane %v73, 7
    %v115 = vsel %vm100, %v113, %v114
    %v116 = vrot.slane %v74, 7
    %v117 = vrot.slane %v75, 7
    %v118 = vsel %vm100, %v116, %v117
    %v131 = vsub.f32 %v76, %v101
    %v132 = vsub.f32 %v77, %v103
    %v133 = vsub.f32 %v78, %v104
    %v134 = vsub.f32 %v79, %v106
    %v135 = vsub.f32 %v80, %v107
    %v136 = vsub.f32 %v81, %v109
    %v137 = vsub.f32 %v82, %v110
    %v138 = vsub.f32 %v83, %v112
    %v139 = vsub.f32 %v84, %v113
    %v140 = vsub.f32 %v85, %v115
    %v141 = vsub.f32 %v86, %v116
    %v142 = vsub.f32 %v87, %v118
    %vm143 = vcmask 1046528
    %v144 = vrot.slane %v64, 1
    %v145 = vrot.slane %v65, 1
    %v146 = vsel %vm143, %v144, %v145
    %v147 = vrot.slane %v66, 1
    %v148 = vrot.slane %v67, 1
    %v149 = vsel %vm143, %v147, %v148
    %v150 = vrot.slane %v68, 1
    %v151 = vrot.slane %v69, 1
    %v152 = vsel %vm143, %v150, %v151
    %v153 = vrot.slane %v70, 1
    %v154 = vrot.slane %v71, 1
    %v155 = vsel %vm143, %v153, %v154
    %v156 = vrot.slane %v72, 1
    %v157 = vrot.slane %v73, 1
    %v158 = vsel %vm143, %v156, %v157
    %v159 = vrot.slane %v74, 1
    %v160 = vrot.slane %v75, 1
    %v161 = vsel %vm143, %v159, %v160
    %v174 = vsub.f32 %v131, %v146
    %v175 = vsub.f32 %v132, %v145
    %v176 = vsub.f32 %v133, %v149
    %v177 = vsub.f32 %v134, %v148
    %v178 = vsub.f32 %v135, %v152
    %v179 = vsub.f32 %v136, %v151
    %v180 = vsub.f32 %v137, %v155
    %v181 = vsub.f32 %v138, %v154
    %v182 = vsub.f32 %v139, %v158
    %v183 = vsub.f32 %v140, %v157
    %v184 = vsub.f32 %v141, %v161
    %v185 = vsub.f32 %v142, %v160
    %186 = vrot.lane.b32.xlu0 %v64, 1
    %v187 = vpop.permute.xlu0 %186
    %188 = vrot.lane.b32.xlu0 %v65, 1
    %v189 = vpop.permute.xlu0 %188
    %190 = vrot.lane.b32.xlu0 %v66, 1
    %v191 = vpop.permute.xlu0 %190
    %192 = vrot.lane.b32.xlu0 %v67, 1
    %v193 = vpop.permute.xlu0 %192
    %194 = vrot.lane.b32.xlu0 %v68, 1
    %v195 = vpop.permute.xlu0 %194
    %196 = vrot.lane.b32.xlu0 %v69, 1
    %v197 = vpop.permute.xlu0 %196
    %198 = vrot.lane.b32.xlu0 %v70, 1
    %v199 = vpop.permute.xlu0 %198
    %200 = vrot.lane.b32.xlu0 %v71, 1
    %v201 = vpop.permute.xlu0 %200
    %202 = vrot.lane.b32.xlu0 %v72, 1
    %v203 = vpop.permute.xlu0 %202
    %204 = vrot.lane.b32.xlu0 %v73, 1
    %v205 = vpop.permute.xlu0 %204
    %206 = vrot.lane.b32.xlu0 %v74, 1
    %v207 = vpop.permute.xlu0 %206
    %208 = vrot.lane.b32.xlu0 %v75, 1
    %v209 = vpop.permute.xlu0 %208
    %v222 = vsub.f32 %v174, %v187
    %v223 = vsub.f32 %v175, %v189
    %v224 = vsub.f32 %v176, %v191
    %v225 = vsub.f32 %v177, %v193
    %v226 = vsub.f32 %v178, %v195
    %v227 = vsub.f32 %v179, %v197
    %v228 = vsub.f32 %v180, %v199
    %v229 = vsub.f32 %v181, %v201
    %v230 = vsub.f32 %v182, %v203
    %v231 = vsub.f32 %v183, %v205
    %v232 = vsub.f32 %v184, %v207
    %v233 = vsub.f32 %v185, %v209
    %234 = vrot.lane.b32.xlu0 %v64, 127
    %v235 = vpop.permute.xlu0 %234
    %236 = vrot.lane.b32.xlu0 %v65, 127
    %v237 = vpop.permute.xlu0 %236
    %238 = vrot.lane.b32.xlu0 %v66, 127
    %v239 = vpop.permute.xlu0 %238
    %240 = vrot.lane.b32.xlu0 %v67, 127
    %v241 = vpop.permute.xlu0 %240
    %242 = vrot.lane.b32.xlu0 %v68, 127
    %v243 = vpop.permute.xlu0 %242
    %244 = vrot.lane.b32.xlu0 %v69, 127
    %v245 = vpop.permute.xlu0 %244
    %246 = vrot.lane.b32.xlu0 %v70, 127
    %v247 = vpop.permute.xlu0 %246
    %248 = vrot.lane.b32.xlu0 %v71, 127
    %v249 = vpop.permute.xlu0 %248
    %250 = vrot.lane.b32.xlu0 %v72, 127
    %v251 = vpop.permute.xlu0 %250
    %252 = vrot.lane.b32.xlu0 %v73, 127
    %v253 = vpop.permute.xlu0 %252
    %254 = vrot.lane.b32.xlu0 %v74, 127
    %v255 = vpop.permute.xlu0 %254
    %256 = vrot.lane.b32.xlu0 %v75, 127
    %v257 = vpop.permute.xlu0 %256
    %v270 = vsub.f32 %v222, %v235
    %v271 = vsub.f32 %v223, %v237
    %v272 = vsub.f32 %v224, %v239
    %v273 = vsub.f32 %v225, %v241
    %v274 = vsub.f32 %v226, %v243
    %v275 = vsub.f32 %v227, %v245
    %v276 = vsub.f32 %v228, %v247
    %v277 = vsub.f32 %v229, %v249
    %v278 = vsub.f32 %v230, %v251
    %v279 = vsub.f32 %v231, %v253
    %v280 = vsub.f32 %v232, %v255
    %v281 = vsub.f32 %v233, %v257
    %v282 = vmul.f32 %v270, %v270
    %v283 = vmul.f32 %v271, %v271
    %v284 = vmul.f32 %v272, %v272
    %v285 = vmul.f32 %v273, %v273
    %v286 = vmul.f32 %v274, %v274
    %v287 = vmul.f32 %v275, %v275
    %v288 = vmul.f32 %v276, %v276
    %v289 = vmul.f32 %v277, %v277
    %v290 = vmul.f32 %v278, %v278
    %v291 = vmul.f32 %v279, %v279
    %v292 = vmul.f32 %v280, %v280
    %v293 = vmul.f32 %v281, %v281
    %vm294 = vcmask 121865
    %v295 = vsel %vm294, %v282, 0.0
    %v296 = vsel %vm294, %v284, 0.0
    %v297 = vadd.f32 %v295, %v296
    %v298 = vsel %vm294, %v286, 0.0
    %v299 = vadd.f32 %v297, %v298
    %v300 = vsel %vm294, %v288, 0.0
    %v301 = vadd.f32 %v299, %v300
    %v302 = vsel %vm294, %v290, 0.0
    %v303 = vadd.f32 %v301, %v302
    %v304 = vsel %vm294, %v292, 0.0
    %v305 = vadd.f32 %v303, %v304
    %vm306 = vcmask 120840
    %v307 = vsel %vm306, %v283, 0.0
    %v308 = vsel %vm306, %v285, 0.0
    %v309 = vadd.f32 %v307, %v308
    %v310 = vsel %vm306, %v287, 0.0
    %v311 = vadd.f32 %v309, %v310
    %v312 = vsel %vm306, %v289, 0.0
    %v313 = vadd.f32 %v311, %v312
    %v314 = vsel %vm306, %v291, 0.0
    %v315 = vadd.f32 %v313, %v314
    %v316 = vsel %vm306, %v293, 0.0
    %v317 = vadd.f32 %v315, %v316
    %v320 = vrot.slane %v305, 1
    %v321 = vrot.slane %v317, 1
    %v322 = vsel %vm143, %v320, %v321
    %vm325 = vcmask 121864
    %v326 = vsel %vm325, %v322, 0.0
    %vm327 = vcmask 119816
    %v328 = vsel %vm327, %v321, 0.0
    %v329 = vadd.f32 %v326, %v328
    %v330 = vrot.slane %v329, 4
    %v331 = vadd.f32 %v329, %v330
    %v332 = vrot.slane %v331, 2
    %v333 = vadd.f32 %v331, %v332
    %v334 = vrot.slane %v333, 1
    %v335 = vadd.f32 %v333, %v334
    %337 = vrot.lane.b32.xlu0 %v335, 127
    %v338 = vpop.permute.xlu0 %337
    %vm340 = vcmask 106496
    %341 = vst.msk [vmem:[#allocation7] sm:$0x1] %vm340, %v338
    // Predicated region
    $region18: #{tpu_custom_call.1} parent=1 // pred_check
      _
    $region19: #{tpu_custom_call.1} parent=1 // pred_check_branch
      %343 = sbr.rel (0) target = $region21
    $region20: #{tpu_custom_call.1} parent=1 // pred_region
      %s345 = ssub.s32 16, 16
      %346 = vsyncadd [#allocation4], %s345
      %s348 = sshll.u32 [#allocation7], 4
      %s349 = int_to_ptr.vmem [resolvable:$true] %s348
      %351 = dma.vmem_to_hbm [thread:$0]  %s349, 16, %s2, [#allocation4]
    $region21: #{tpu_custom_call.1} parent=1 // pred_fallthru
      _
    // Predicated region
    $region22: #{tpu_custom_call.1} parent=1 // pred_check
      _
    $region23: #{tpu_custom_call.1} parent=1 // pred_check_branch
      %353 = sbr.rel (0) target = $region25
    $region24: #{tpu_custom_call.1} parent=1 // pred_region
      %354 = dma.done [#allocation4], 16
    $region25: #{tpu_custom_call.1} parent=1 // pred_fallthru
      _
    %355 = vsyncpa [#allocation3], 1
    %356 = vsyncpa [#allocation6], 1
    %357 = vsyncpa [#allocation4], 1

</llo_original>
